<compile_context>
chip_gen: v6e
topology: v6e:2x2x1
jax: 0.10.0
libtpu: 0.0.40
codegen_flags: <defaults>
</compile_context>

<pallas_src>
import jax
import jax.numpy as jnp
from jax.experimental import pallas as pl
from jax.experimental.pallas import tpu as pltpu

_MIB = 1024 * 1024


def _round_up(n, m):
    return ((n + m - 1) // m) * m


def _leaky_relu(x, negative_slope=0.01):
    # max(x, a*x) == LeakyReLU(x) for 0 < a < 1 (torch default a = 0.01).
    return jnp.maximum(x, negative_slope * x)


def payne_kernel(x_ref, w1t_ref, b1_ref, w2t_ref, b2_ref, w3t_ref, b3_ref,
                 o_ref, h2_ref):
    """One (batch_tile, pixel_tile) grid step, batch-major layout.

    Grid = (batch tiles [parallel], pixel tiles [arbitrary]).  Layers 1-2 run only
    at p_idx == 0 for each batch tile and cache h2 in VMEM scratch; every pixel
    tile then performs only the layer-3 matmul against its w3 column block.
    """
    p_idx = pl.program_id(1)

    @pl.when(p_idx == 0)
    def _compute_hidden():
        x = x_ref[...]                                                # (tb, Din)
        # Layer 1: (tb, Din) @ (Din, N) -> (tb, N); f32 accumulate, bias+act in f32.
        h1 = jnp.dot(x, w1t_ref[...], preferred_element_type=jnp.float32)
        h1 = _leaky_relu(h1 + b1_ref[...])
        # Layer 2: (tb, N) @ (N, N) -> (tb, N)
        h2 = jnp.dot(h1.astype(w2t_ref.dtype), w2t_ref[...],
                     preferred_element_type=jnp.float32)
        h2 = _leaky_relu(h2 + b2_ref[...])
        h2_ref[...] = h2.astype(h2_ref.dtype)                        # cache across P tiles

    # Layer 3 (per pixel tile): (tb, N) @ (N, tp) -> (tb, tp); no activation.
    out = jnp.dot(h2_ref[...], w3t_ref[...], preferred_element_type=jnp.float32)
    o_ref[...] = (out + b3_ref[...]).astype(o_ref.dtype)


def payne_perceptron(x, params, *, block_b=None, block_p=512,
                     param_dtype=jnp.bfloat16, out_dtype=None):
    """Forward pass of PaynePerceptron.

    x: (batch, dim_in) float32
    params (PyTorch convention):
        w1 (num_neurons, dim_in),      b1 (num_neurons,)
        w2 (num_neurons, num_neurons), b2 (num_neurons,)
        w3 (num_pixel, num_neurons),   b3 (num_pixel,)
    Returns (batch, num_pixel) in out_dtype (defaults to x.dtype).
    """
    batch, dim_in = x.shape
    num_neurons = params["w1"].shape[0]
    num_pixel = params["w3"].shape[0]
    out_dtype = x.dtype if out_dtype is None else out_dtype

    itm = jnp.dtype(param_dtype).itemsize
    out_itm = jnp.dtype(out_dtype).itemsize

    # ---- generation-aware VMEM budget --------------------------------------
    try:
        vmem_cap = int(pltpu.get_tpu_info().vmem_capacity_bytes)
    except Exception:  # pragma: no cover - conservative fallback
        vmem_cap = 128 * _MIB
    vmem_budget = (vmem_cap * 3) // 4   # ~48 MiB on v7x (64 MiB), ~96 MiB on v5e/v6e

    # ---- default batch tile (sweep point; smaller on VMEM-limited v7x) -----
    if block_b is None:
        block_b = 512 if vmem_cap <= 64 * _MIB else 1024

    # ---- feature padding: lane dims to 128 multiples ------------------------
    din_p = _round_up(dim_in, 128)            # lane dim of x / K of layer 1
    nn_p = _round_up(num_neurons, 128)        # lane dim of w1t/w2t, K of layers 2-3
    block_p = _round_up(max(128, min(block_p, _round_up(num_pixel, 128))), 128)
    np_p = _round_up(num_pixel, block_p)      # pixel axis tiled by block_p

    # ---- batch tiling: >=2 tiles when possible so both v7x TCs get work -----
    batch128 = _round_up(batch, 128)
    if batch128 >= 256:
        block_b = min(block_b, _round_up((batch128 + 1) // 2, 128))
    else:
        block_b = 128
    block_b = _round_up(block_b, 128)
    batch_p = _round_up(batch, block_b)
    grid = (batch_p // block_b, np_p // block_p)

    # ---- pad / transpose parameters (weights as (in, out), biases as rows) --
    def pad2(a, rows, cols):
        return jnp.pad(a, ((0, rows - a.shape[0]), (0, cols - a.shape[1])))

    w1t = pad2(params["w1"].T, din_p, nn_p).astype(param_dtype)      # (Din, N)
    w2t = pad2(params["w2"].T, nn_p, nn_p).astype(param_dtype)       # (N, N)
    w3t = pad2(params["w3"].T, nn_p, np_p).astype(param_dtype)       # (N, P)
    b1 = jnp.pad(params["b1"], (0, nn_p - num_neurons)).reshape(1, nn_p).astype(jnp.float32)
    b2 = jnp.pad(params["b2"], (0, nn_p - num_neurons)).reshape(1, nn_p).astype(jnp.float32)
    b3 = jnp.pad(params["b3"], (0, np_p - num_pixel)).reshape(1, np_p).astype(jnp.float32)

    x_p = jnp.pad(x, ((0, batch_p - batch), (0, din_p - dim_in))).astype(param_dtype)

    # ---- VMEM estimate from the actual tile shapes ---------------------------
    vmem_est = (
        2 * block_b * din_p * itm            # x tile (double-buffered)
        + din_p * nn_p * itm + nn_p * 4      # w1t + b1 (single-buffered)
        + nn_p * nn_p * itm + nn_p * 4       # w2t + b2 (single-buffered)
        + 2 * nn_p * block_p * itm           # w3t tile (double-buffered)
        + 2 * block_p * 4                    # b3 tile
        + 2 * block_b * block_p * out_itm    # out tile (double-buffered)
        + block_b * nn_p * itm               # h2 VMEM scratch
        + 2 * block_b * nn_p * 4             # h1/h2 f32 temporaries
        + block_b * block_p * 4              # layer-3 f32 accumulator
    )
    vmem_limit = int(min(vmem_budget, max(2 * vmem_est, 32 * _MIB)))

    n_bt = batch_p // block_b
    flops = 2 * batch_p * (din_p * nn_p + nn_p * nn_p + nn_p * np_p)
    bytes_accessed = (batch_p * din_p * itm
                      + (din_p * nn_p + nn_p * nn_p) * itm
                      + n_bt * nn_p * np_p * itm        # w3 re-streamed per batch tile
                      + batch_p * np_p * out_itm)

    const = pl.Buffered(1)   # constant-index blocks: no wasted double buffer
    in_specs = [
        pl.BlockSpec((block_b, din_p), lambda i, p: (i, 0)),                       # x tile
        pl.BlockSpec((din_p, nn_p), lambda i, p: (0, 0), pipeline_mode=const),     # w1^T
        pl.BlockSpec((1, nn_p), lambda i, p: (0, 0), pipeline_mode=const),         # b1
        pl.BlockSpec((nn_p, nn_p), lambda i, p: (0, 0), pipeline_mode=const),      # w2^T
        pl.BlockSpec((1, nn_p), lambda i, p: (0, 0), pipeline_mode=const),         # b2
        pl.BlockSpec((nn_p, block_p), lambda i, p: (0, p)),                        # w3^T tile
        pl.BlockSpec((1, block_p), lambda i, p: (0, p)),                           # b3 tile
    ]
    out_specs = pl.BlockSpec((block_b, block_p), lambda i, p: (i, p))

    out = pl.pallas_call(
        payne_kernel,
        out_shape=jax.ShapeDtypeStruct((batch_p, np_p), out_dtype),
        grid_spec=pltpu.PrefetchScalarGridSpec(
            num_scalar_prefetch=0,
            grid=grid,
            in_specs=in_specs,
            out_specs=out_specs,
            scratch_shapes=[pltpu.VMEM((block_b, nn_p), param_dtype)],   # h2 cache
        ),
        compiler_params=pltpu.CompilerParams(
            dimension_semantics=("parallel", "arbitrary"),
            vmem_limit_bytes=vmem_limit,
        ),
        cost_estimate=pl.CostEstimate(
            flops=int(flops), transcendentals=0, bytes_accessed=int(bytes_accessed)),
    )(x_p, w1t, b1, w2t, b2, w3t, b3)

    # Already batch-major: just drop the padding (no extra HBM transpose pass).
    return out[:batch, :num_pixel]


def init_params(key, dim_in, num_pixel, num_neurons):
    """Deterministic synthetic init (PyTorch nn.Linear-style uniform bounds)."""
    ks = jax.random.split(key, 6)

    def linear_init(kw, kb, fan_in, fan_out):
        bound = 1.0 / jnp.sqrt(fan_in)
        w = jax.random.uniform(kw, (fan_out, fan_in), jnp.float32, -bound, bound)
        b = jax.random.uniform(kb, (fan_out,), jnp.float32, -bound, bound)
        return w, b

    w1, b1 = linear_init(ks[0], ks[1], dim_in, num_neurons)
    w2, b2 = linear_init(ks[2], ks[3], num_neurons, num_neurons)
    w3, b3 = linear_init(ks[4], ks[5], num_neurons, num_pixel)
    return {"w1": w1, "b1": b1, "w2": w2, "b2": b2, "w3": w3, "b3": b3}


def payne_reference(x, p):
    h1 = _leaky_relu(x @ p["w1"].T + p["b1"])
    h2 = _leaky_relu(h1 @ p["w2"].T + p["b2"])
    return h2 @ p["w3"].T + p["b3"]


if __name__ == "__main__":
    # Small shapes consistent with the module: stellar-label input -> spectrum pixels.
    dim_in, num_pixel, num_neurons = 8, 16, 32
    batch = 16

    key = jax.random.PRNGKey(0)
    kx, kp = jax.random.split(key)
    x = jax.random.normal(kx, (batch, dim_in), jnp.float32)
    params = init_params(kp, dim_in, num_pixel, num_neurons)

    ref = payne_reference(x, params)

    # f32 parameter path: tight validation of kernel structure / tiling / padding.
    out_f32 = jax.block_until_ready(
        payne_perceptron(x, params, param_dtype=jnp.float32))
    assert out_f32.shape == (batch, num_pixel)
    assert jnp.allclose(out_f32, ref, atol=1e-4, rtol=1e-4), "f32 path mismatch"

    # Default bf16 MXU path with f32 accumulation: relaxed tolerance.
    out_bf16 = jax.block_until_ready(payne_perceptron(x, params))
    assert out_bf16.shape == (batch, num_pixel)
    assert jnp.allclose(out_bf16, ref, atol=5e-2, rtol=5e-2), "bf16 path mismatch"

    print("KERNEL_OK")
</pallas_src>

<mosaic_0001>
module attributes {stable_mosaic.version = 11 : i64} {
  func.func @payne_kernel(%arg0: i32, %arg1: i32, %arg2: memref<128x128xf32, #tpu.memory_space<vmem>>, %arg3: memref<128x128xf32, #tpu.memory_space<vmem>>, %arg4: memref<1x128xf32, #tpu.memory_space<vmem>>, %arg5: memref<128x128xf32, #tpu.memory_space<vmem>>, %arg6: memref<1x128xf32, #tpu.memory_space<vmem>>, %arg7: memref<128x128xf32, #tpu.memory_space<vmem>>, %arg8: memref<1x128xf32, #tpu.memory_space<vmem>>, %arg9: memref<128x128xf32, #tpu.memory_space<vmem>>, %arg10: memref<128x128xf32, #tpu.memory_space<vmem>>) attributes {dimension_semantics = [#tpu.dimension_semantics<parallel>, #tpu.dimension_semantics<arbitrary>], iteration_bounds = array<i64: 1, 1>, scalar_prefetch = 0 : i64, scratch_operands = 1 : i64, tpu.core_type = #tpu.core_type<tc>, window_params = [{transform_indices = @transform_0, window_bounds = array<i64: 128, 128>}, {pipeline_mode = #tpu.pipeline_mode<synchronous>, transform_indices = @transform_1, window_bounds = array<i64: 128, 128>}, {pipeline_mode = #tpu.pipeline_mode<synchronous>, transform_indices = @transform_2, window_bounds = array<i64: 1, 128>}, {pipeline_mode = #tpu.pipeline_mode<synchronous>, transform_indices = @transform_3, window_bounds = array<i64: 128, 128>}, {pipeline_mode = #tpu.pipeline_mode<synchronous>, transform_indices = @transform_4, window_bounds = array<i64: 1, 128>}, {transform_indices = @transform_5, window_bounds = array<i64: 128, 128>}, {transform_indices = @transform_6, window_bounds = array<i64: 1, 128>}, {transform_indices = @transform_7, window_bounds = array<i64: 128, 128>}]} {
    %c0_i32 = arith.constant 0 : i32
    %0 = arith.cmpi eq, %arg1, %c0_i32 : i32
    %1 = arith.extui %0 : i1 to i32
    %c0_i32_0 = arith.constant 0 : i32
    %2 = arith.cmpi ne, %1, %c0_i32_0 : i32
    scf.if %2 {
      %c0_8 = arith.constant 0 : index
      %c0_9 = arith.constant 0 : index
      %10 = vector.load %arg2[%c0_8, %c0_9] : memref<128x128xf32, #tpu.memory_space<vmem>>, vector<128x128xf32>
      %c0_10 = arith.constant 0 : index
      %c0_11 = arith.constant 0 : index
      %11 = vector.load %arg3[%c0_10, %c0_11] : memref<128x128xf32, #tpu.memory_space<vmem>>, vector<128x128xf32>
      %cst_12 = arith.constant dense<0.000000e+00> : vector<128x128xf32>
      %12 = tpu.matmul %10, %11, %cst_12 {dimension_numbers = #tpu.dot_dimension_numbers<[1], [0], [0], [1], [0, 0, 1, 1], [], []>} : vector<128x128xf32>, vector<128x128xf32>, vector<128x128xf32> -> vector<128x128xf32>
      %c0_13 = arith.constant 0 : index
      %c0_14 = arith.constant 0 : index
      %13 = vector.load %arg4[%c0_13, %c0_14] : memref<1x128xf32, #tpu.memory_space<vmem>>, vector<1x128xf32>
      %14 = vector.broadcast %13 : vector<1x128xf32> to vector<128x128xf32>
      %15 = arith.addf %12, %14 : vector<128x128xf32>
      %cst_15 = arith.constant 0.00999999977 : f32
      %16 = vector.broadcast %cst_15 : f32 to vector<128x128xf32>
      %17 = arith.mulf %16, %15 : vector<128x128xf32>
      %18 = arith.maximumf %15, %17 : vector<128x128xf32>
      %c0_16 = arith.constant 0 : index
      %c0_17 = arith.constant 0 : index
      %19 = vector.load %arg5[%c0_16, %c0_17] : memref<128x128xf32, #tpu.memory_space<vmem>>, vector<128x128xf32>
      %cst_18 = arith.constant dense<0.000000e+00> : vector<128x128xf32>
      %20 = tpu.matmul %18, %19, %cst_18 {dimension_numbers = #tpu.dot_dimension_numbers<[1], [0], [0], [1], [0, 0, 1, 1], [], []>} : vector<128x128xf32>, vector<128x128xf32>, vector<128x128xf32> -> vector<128x128xf32>
      %c0_19 = arith.constant 0 : index
      %c0_20 = arith.constant 0 : index
      %21 = vector.load %arg6[%c0_19, %c0_20] : memref<1x128xf32, #tpu.memory_space<vmem>>, vector<1x128xf32>
      %22 = vector.broadcast %21 : vector<1x128xf32> to vector<128x128xf32>
      %23 = arith.addf %20, %22 : vector<128x128xf32>
      %cst_21 = arith.constant 0.00999999977 : f32
      %24 = vector.broadcast %cst_21 : f32 to vector<128x128xf32>
      %25 = arith.mulf %24, %23 : vector<128x128xf32>
      %26 = arith.maximumf %23, %25 : vector<128x128xf32>
      %c0_22 = arith.constant 0 : index
      %c0_23 = arith.constant 0 : index
      %27 = vector.load %arg10[%c0_22, %c0_23] : memref<128x128xf32, #tpu.memory_space<vmem>>, vector<128x128xf32>
      tpu.vector_store %arg10[%c0_22, %c0_23], %26 {strides = array<i32>} : memref<128x128xf32, #tpu.memory_space<vmem>>, vector<128x128xf32>,
    } else {
    }
    %c0 = arith.constant 0 : index
    %c0_1 = arith.constant 0 : index
    %3 = vector.load %arg10[%c0, %c0_1] : memref<128x128xf32, #tpu.memory_space<vmem>>, vector<128x128xf32>
    %c0_2 = arith.constant 0 : index
    %c0_3 = arith.constant 0 : index
    %4 = vector.load %arg7[%c0_2, %c0_3] : memref<128x128xf32, #tpu.memory_space<vmem>>, vector<128x128xf32>
    %cst = arith.constant dense<0.000000e+00> : vector<128x128xf32>
    %5 = tpu.matmul %3, %4, %cst {dimension_numbers = #tpu.dot_dimension_numbers<[1], [0], [0], [1], [0, 0, 1, 1], [], []>} : vector<128x128xf32>, vector<128x128xf32>, vector<128x128xf32> -> vector<128x128xf32>
    %c0_4 = arith.constant 0 : index
    %c0_5 = arith.constant 0 : index
    %6 = vector.load %arg8[%c0_4, %c0_5] : memref<1x128xf32, #tpu.memory_space<vmem>>, vector<1x128xf32>
    %7 = vector.broadcast %6 : vector<1x128xf32> to vector<128x128xf32>
    %8 = arith.addf %5, %7 : vector<128x128xf32>
    %c0_6 = arith.constant 0 : index
    %c0_7 = arith.constant 0 : index
    %9 = vector.load %arg9[%c0_6, %c0_7] : memref<128x128xf32, #tpu.memory_space<vmem>>, vector<128x128xf32>
    tpu.vector_store %arg9[%c0_6, %c0_7], %8 {strides = array<i32>} : memref<128x128xf32, #tpu.memory_space<vmem>>, vector<128x128xf32>,
    return
  }
  func.func @transform_0(%arg0: i32, %arg1: i32) -> (i32, i32) {
    %c0_i32 = arith.constant 0 : i32
    %c0_i32_0 = arith.constant 0 : i32
    return %arg0, %c0_i32 : i32, i32
  }
  func.func @transform_1(%arg0: i32, %arg1: i32) -> (i32, i32) {
    %c0_i32 = arith.constant 0 : i32
    %c0_i32_0 = arith.constant 0 : i32
    %c0_i32_1 = arith.constant 0 : i32
    return %c0_i32, %c0_i32_0 : i32, i32
  }
  func.func @transform_2(%arg0: i32, %arg1: i32) -> (i32, i32) {
    %c0_i32 = arith.constant 0 : i32
    %c0_i32_0 = arith.constant 0 : i32
    %c0_i32_1 = arith.constant 0 : i32
    return %c0_i32, %c0_i32_0 : i32, i32
  }
  func.func @transform_3(%arg0: i32, %arg1: i32) -> (i32, i32) {
    %c0_i32 = arith.constant 0 : i32
    %c0_i32_0 = arith.constant 0 : i32
    %c0_i32_1 = arith.constant 0 : i32
    return %c0_i32, %c0_i32_0 : i32, i32
  }
  func.func @transform_4(%arg0: i32, %arg1: i32) -> (i32, i32) {
    %c0_i32 = arith.constant 0 : i32
    %c0_i32_0 = arith.constant 0 : i32
    %c0_i32_1 = arith.constant 0 : i32
    return %c0_i32, %c0_i32_0 : i32, i32
  }
  func.func @transform_5(%arg0: i32, %arg1: i32) -> (i32, i32) {
    %c0_i32 = arith.constant 0 : i32
    %c0_i32_0 = arith.constant 0 : i32
    return %c0_i32, %arg1 : i32, i32
  }
  func.func @transform_6(%arg0: i32, %arg1: i32) -> (i32, i32) {
    %c0_i32 = arith.constant 0 : i32
    %c0_i32_0 = arith.constant 0 : i32
    return %c0_i32, %arg1 : i32, i32
  }
  func.func @transform_7(%arg0: i32, %arg1: i32) -> (i32, i32) {
    %c0_i32 = arith.constant 0 : i32
    return %arg0, %arg1 : i32, i32
  }
}

</mosaic_0001>

<llo_original>
// kernel: tpu_custom_call.1
$region0: #{tpu_custom_call.1}
  #allocation0 [shape = 'u32[]', space=smem, size = 0x4, offset = 0x4, fixed_abs, tag = 'smem constant byte address 0x4 - core index']
  #allocation1 [shape = 'u32[144,128]{1,0:T(1,128)}', space=vmem, size = 0x12000, scoped, tag = 'internal scratch']
  #allocation2 [shape = 'f32[128,128]{1,0:T(8,128)}', space=vmem, size = 0x10000, scoped, tag = 'scratch operand']
  %s0 = inlined_call_operand.hbm [shape: f32[128,128], index: 0, kind: input, shape index: {}]
  %s1 = inlined_call_operand.hbm [shape: f32[128,128], index: 1, kind: input, shape index: {}]
  %s2 = inlined_call_operand.vmem [shape: f32[1,128], index: 2, kind: input, shape index: {}]
  %s3 = inlined_call_operand.hbm [shape: f32[128,128], index: 3, kind: input, shape index: {}]
  %s4 = inlined_call_operand.vmem [shape: f32[1,128], index: 4, kind: input, shape index: {}]
  %s5 = inlined_call_operand.hbm [shape: f32[128,128], index: 5, kind: input, shape index: {}]
  %s6 = inlined_call_operand.vmem [shape: f32[1,128], index: 6, kind: input, shape index: {}]
  %s7 = inlined_call_operand.hbm [shape: f32[128,128], index: 7, kind: output, shape index: {}]
  %s8 = sld [smem:[#allocation0]]
  $region58: #{tpu_custom_call.1} parent=0
    _
  %s10 = ssub.s32 1, %s8
  %s11 = scalar_select 0, %s10, %s8
  $region1: #{tpu_custom_call.1} parent=0
    #allocation3 [shape = 'u8[65536]{0}', space=vmem, size = 0x10000, scoped, tag = 'input window, operand 0, single buffered']
    #allocation4 [shape = 's32[1]{0}', space=sflag, size = 0x4, scoped, tag = 'scoped memory for tpu_custom_call.1']
    #allocation5 [shape = 's32[1]{0}', space=sflag, size = 0x4, scoped, tag = 'scoped memory for tpu_custom_call.1']
    #allocation6 [shape = 'u8[65536]{0}', space=vmem, size = 0x10000, scoped, tag = 'input window, operand 1, single buffered']
    #allocation7 [shape = 's32[1]{0}', space=sflag, size = 0x4, scoped, tag = 'scoped memory for tpu_custom_call.1']
    #allocation8 [shape = 'u8[65536]{0}', space=vmem, size = 0x10000, scoped, tag = 'input window, operand 3, single buffered']
    #allocation9 [shape = 'u8[65536]{0}', space=vmem, size = 0x10000, scoped, tag = 'input window, operand 5, single buffered']
    #allocation10 [shape = 's32[1]{0}', space=sflag, size = 0x4, scoped, tag = 'scoped memory for tpu_custom_call.1']
    #allocation11 [shape = 'u8[65536]{0}', space=vmem, size = 0x10000, scoped, tag = 'output window, operand 0, single buffered']
    %12 = vsyncpa [#allocation4], 0
    %13 = vsyncpa [#allocation7], 0
    %14 = vsyncpa [#allocation10], 0
    %15 = vsyncpa [#allocation5], 0
    // Predicated region
    $region2: #{tpu_custom_call.1} parent=1 // pred_check
      _
    $region3: #{tpu_custom_call.1} parent=1 // pred_check_branch
      %17 = sbr.rel (0) target = $region5
    $region4: #{tpu_custom_call.1} parent=1 // pred_region
      %s19 = ssub.s32 2048, 2048
      %20 = vsyncadd [#allocation4], %s19
      %s21 = sshll.u32 [#allocation3], 4
      %s22 = int_to_ptr.vmem [resolvable:$true] %s21
      %27 = dma.hbm_to_vmem [thread:$0]  %s0, 2048, %s22, [#allocation4], 128, 128, 8
    $region5: #{tpu_custom_call.1} parent=1 // pred_fallthru
      _
    // Predicated region
    $region6: #{tpu_custom_call.1} parent=1 // pred_check
      _
    $region7: #{tpu_custom_call.1} parent=1 // pred_check_branch
      %29 = sbr.rel (0) target = $region9
    $region8: #{tpu_custom_call.1} parent=1 // pred_region
      %s31 = ssub.s32 2048, 2048
      %32 = vsyncadd [#allocation7], %s31
      %s33 = sshll.u32 [#allocation6], 4
      %s34 = int_to_ptr.vmem [resolvable:$true] %s33
      %39 = dma.hbm_to_vmem [thread:$0]  %s1, 2048, %s34, [#allocation7], 128, 128, 8
    $region9: #{tpu_custom_call.1} parent=1 // pred_fallthru
      _
    // Predicated region
    $region10: #{tpu_custom_call.1} parent=1 // pred_check
      _
    $region11: #{tpu_custom_call.1} parent=1 // pred_check_branch
      %41 = sbr.rel (0) target = $region13
    $region12: #{tpu_custom_call.1} parent=1 // pred_region
      _
    $region13: #{tpu_custom_call.1} parent=1 // pred_fallthru
      _
    // Predicated region
    $region14: #{tpu_custom_call.1} parent=1 // pred_check
      _
    $region15: #{tpu_custom_call.1} parent=1 // pred_check_branch
      %43 = sbr.rel (0) target = $region17
    $region16: #{tpu_custom_call.1} parent=1 // pred_region
      %s45 = ssub.s32 2048, 2048
      %46 = vsyncadd [#allocation7], %s45
      %s47 = sshll.u32 [#allocation8], 4
      %s48 = int_to_ptr.vmem [resolvable:$true] %s47
      %53 = dma.hbm_to_vmem [thread:$0]  %s3, 2048, %s48, [#allocation7], 128, 128, 8
    $region17: #{tpu_custom_call.1} parent=1 // pred_fallthru
      _
    // Predicated region
    $region18: #{tpu_custom_call.1} parent=1 // pred_check
      _
    $region19: #{tpu_custom_call.1} parent=1 // pred_check_branch
      %55 = sbr.rel (0) target = $region21
    $region20: #{tpu_custom_call.1} parent=1 // pred_region
      _
    $region21: #{tpu_custom_call.1} parent=1 // pred_fallthru
      _
    // Predicated region
    $region22: #{tpu_custom_call.1} parent=1 // pred_check
      _
    $region23: #{tpu_custom_call.1} parent=1 // pred_check_branch
      %57 = sbr.rel (0) target = $region25
    $region24: #{tpu_custom_call.1} parent=1 // pred_region
      %s59 = ssub.s32 2048, 2048
      %60 = vsyncadd [#allocation10], %s59
      %s61 = sshll.u32 [#allocation9], 4
      %s62 = int_to_ptr.vmem [resolvable:$true] %s61
      %67 = dma.hbm_to_vmem [thread:$0]  %s5, 2048, %s62, [#allocation10], 128, 128, 8
    $region25: #{tpu_custom_call.1} parent=1 // pred_fallthru
      _
    // Predicated region
    $region26: #{tpu_custom_call.1} parent=1 // pred_check
      _
    $region27: #{tpu_custom_call.1} parent=1 // pred_check_branch
      %69 = sbr.rel (0) target = $region29
    $region28: #{tpu_custom_call.1} parent=1 // pred_region
      _
    $region29: #{tpu_custom_call.1} parent=1 // pred_fallthru
      _
    // Predicated region
    $region30: #{tpu_custom_call.1} parent=1 // pred_check
      _
    $region31: #{tpu_custom_call.1} parent=1 // pred_check_branch
      %71 = sbr.rel (0) target = $region33
    $region32: #{tpu_custom_call.1} parent=1 // pred_region
      %72 = dma.done [#allocation4], 2048
    $region33: #{tpu_custom_call.1} parent=1 // pred_fallthru
      _
    // Predicated region
    $region34: #{tpu_custom_call.1} parent=1 // pred_check
      _
    $region35: #{tpu_custom_call.1} parent=1 // pred_check_branch
      %74 = sbr.rel (0) target = $region37
    $region36: #{tpu_custom_call.1} parent=1 // pred_region
      %75 = dma.done [#allocation7], 2048
    $region37: #{tpu_custom_call.1} parent=1 // pred_fallthru
      _
    // Predicated region
    $region38: #{tpu_custom_call.1} parent=1 // pred_check
      _
    $region39: #{tpu_custom_call.1} parent=1 // pred_check_branch
      %77 = sbr.rel (0) target = $region41
    $region40: #{tpu_custom_call.1} parent=1 // pred_region
      %78 = dma.done [#allocation7], 2048
    $region41: #{tpu_custom_call.1} parent=1 // pred_fallthru
      _
    // Predicated region
    $region42: #{tpu_custom_call.1} parent=1 // pred_check
      _
    $region43: #{tpu_custom_call.1} parent=1 // pred_check_branch
      %80 = sbr.rel (0) target = $region45
    $region44: #{tpu_custom_call.1} parent=1 // pred_region
      %81 = dma.done [#allocation10], 2048
    $region45: #{tpu_custom_call.1} parent=1 // pred_fallthru
      _
    %p82 = scmp.eq.s32.totalorder 0, 0
    // Predicated region
    $region46: #{tpu_custom_call.1} parent=1 // pred_check
      %p83 = pneg %p82
    $region47: #{tpu_custom_call.1} parent=1 // pred_check_branch
      %85 = sbr.rel (%p83) target = $region49
    $region48: #{tpu_custom_call.1} parent=1 // pred_region
      %v86 = vld [vmem:[#allocation3] sm:$0xff]
      %v87 = vld [vmem:[#allocation3 + $0x8] sm:$0xff]
      %v88 = vld [vmem:[#allocation3 + $0x10] sm:$0xff]
      %v89 = vld [vmem:[#allocation3 + $0x18] sm:$0xff]
      %v90 = vld [vmem:[#allocation3 + $0x20] sm:$0xff]
      %v91 = vld [vmem:[#allocation3 + $0x28] sm:$0xff]
      %v92 = vld [vmem:[#allocation3 + $0x30] sm:$0xff]
      %v93 = vld [vmem:[#allocation3 + $0x38] sm:$0xff]
      %v94 = vld [vmem:[#allocation3 + $0x40] sm:$0xff]
      %v95 = vld [vmem:[#allocation3 + $0x48] sm:$0xff]
      %v96 = vld [vmem:[#allocation3 + $0x50] sm:$0xff]
      %v97 = vld [vmem:[#allocation3 + $0x58] sm:$0xff]
      %v98 = vld [vmem:[#allocation3 + $0x60] sm:$0xff]
      %v99 = vld [vmem:[#allocation3 + $0x68] sm:$0xff]
      %v100 = vld [vmem:[#allocation3 + $0x70] sm:$0xff]
      %v101 = vld [vmem:[#allocation3 + $0x78] sm:$0xff]
      %v102 = vld [vmem:[#allocation6] sm:$0xff]
      %v103 = vld [vmem:[#allocation6 + $0x8] sm:$0xff]
      %v104 = vld [vmem:[#allocation6 + $0x10] sm:$0xff]
      %v105 = vld [vmem:[#allocation6 + $0x18] sm:$0xff]
      %v106 = vld [vmem:[#allocation6 + $0x20] sm:$0xff]
      %v107 = vld [vmem:[#allocation6 + $0x28] sm:$0xff]
      %v108 = vld [vmem:[#allocation6 + $0x30] sm:$0xff]
      %v109 = vld [vmem:[#allocation6 + $0x38] sm:$0xff]
      %v110 = vld [vmem:[#allocation6 + $0x40] sm:$0xff]
      %v111 = vld [vmem:[#allocation6 + $0x48] sm:$0xff]
      %v112 = vld [vmem:[#allocation6 + $0x50] sm:$0xff]
      %v113 = vld [vmem:[#allocation6 + $0x58] sm:$0xff]
      %v114 = vld [vmem:[#allocation6 + $0x60] sm:$0xff]
      %v115 = vld [vmem:[#allocation6 + $0x68] sm:$0xff]
      %v116 = vld [vmem:[#allocation6 + $0x70] sm:$0xff]
      %v117 = vld [vmem:[#allocation6 + $0x78] sm:$0xff]
      %v118 = vld [vmem:[%s2] sm:$0x1]
      %v120 = vlaneseq
      %v121 = vshrl.u32 %v120, 7
      %v122 = vsub.s32 0, %v121
      %v123 = vrot.slane %v118, %v122
      %125 = vmatprep.subr.mxu0 0.0
      %126 = vmatpush1.msra.mxu0 %v117
      %127 = vmatprep.subr.mxu0 0.0
      %128 = vmatpush1.msra.mxu0 %v116
      %129 = vmatprep.subr.mxu0 0.0
      %130 = vmatpush1.msra.mxu0 %v115
      %131 = vmatprep.subr.mxu0 0.0
      %132 = vmatpush1.msra.mxu0 %v114
      %133 = vmatprep.subr.mxu0 0.0
      %134 = vmatpush1.msra.mxu0 %v113
      %135 = vmatprep.subr.mxu0 0.0
      %136 = vmatpush1.msra.mxu0 %v112
      %137 = vmatprep.subr.mxu0 0.0
      %138 = vmatpush1.msra.mxu0 %v111
      %139 = vmatprep.subr.mxu0 0.0
      %140 = vmatpush1.msra.mxu0 %v110
      %141 = vmatprep.subr.mxu0 0.0
      %142 = vmatpush1.msra.mxu0 %v109
      %143 = vmatprep.subr.mxu0 0.0
      %144 = vmatpush1.msra.mxu0 %v108
      %145 = vmatprep.subr.mxu0 0.0
      %146 = vmatpush1.msra.mxu0 %v107
      %147 = vmatprep.subr.mxu0 0.0
      %148 = vmatpush1.msra.mxu0 %v106
      %149 = vmatprep.subr.mxu0 0.0
      %150 = vmatpush1.msra.mxu0 %v105
      %151 = vmatprep.subr.mxu0 0.0
      %152 = vmatpush1.msra.mxu0 %v104
      %153 = vmatprep.subr.mxu0 0.0
      %154 = vmatpush1.msra.mxu0 %v103
      %155 = vmatprep.subr.mxu0 0.0
      %156 = vmatpush1.msra.mxu0 %v102
      %157 = vmatprep.subr.mxu0 0.0
      %158 = vmatpush2.msra.mxu0 0.0
      %159 = vmatprep.subr.mxu0 0.0
      %160 = vmatpush2.msra.mxu0 0.0
      %161 = vmatprep.subr.mxu0 0.0
      %162 = vmatpush2.msra.mxu0 0.0
      %163 = vmatprep.subr.mxu0 0.0
      %164 = vmatpush2.msra.mxu0 0.0
      %165 = vmatprep.subr.mxu0 0.0
      %166 = vmatpush2.msra.mxu0 0.0
      %167 = vmatprep.subr.mxu0 0.0
      %168 = vmatpush2.msra.mxu0 0.0
      %169 = vmatprep.subr.mxu0 0.0
      %170 = vmatpush2.msra.mxu0 0.0
      %171 = vmatprep.subr.mxu0 0.0
      %172 = vmatpush2.msra.mxu0 0.0
      %173 = vmatprep.subr.mxu0 0.0
      %174 = vmatpush2.msra.mxu0 0.0
      %175 = vmatprep.subr.mxu0 0.0
      %176 = vmatpush2.msra.mxu0 0.0
      %177 = vmatprep.subr.mxu0 0.0
      %178 = vmatpush2.msra.mxu0 0.0
      %179 = vmatprep.subr.mxu0 0.0
      %180 = vmatpush2.msra.mxu0 0.0
      %181 = vmatprep.subr.mxu0 0.0
      %182 = vmatpush2.msra.mxu0 0.0
      %183 = vmatprep.subr.mxu0 0.0
      %184 = vmatpush2.msra.mxu0 0.0
      %185 = vmatprep.subr.mxu0 0.0
      %186 = vmatpush2.msra.mxu0 0.0
      %187 = vmatprep.subr.mxu0 0.0
      %188 = vmatpush2.msra.mxu0 0.0
      %189 = vmatprep.mubr.f32.mxu0 0.0
      %190 = vmatmul.mubr.f32.gmra.mxu0 %v86
      %v191 = vpop.f32.mrf.mxu0
      %v192 = vadd.f32 %v123, %v191
      %v193 = vpop.f32.mrf.mxu0
      %194 = vmatprep.mubr.f32.mxu0 0.0
      %195 = vmatmul.mubr.f32.gmra.mxu0 %v87
      %v196 = vpop.f32.mrf.mxu0
      %v197 = vadd.f32 %v123, %v196
      %v198 = vpop.f32.mrf.mxu0
      %199 = vmatprep.mubr.f32.mxu0 0.0
      %200 = vmatmul.mubr.f32.gmra.mxu0 %v88
      %v201 = vpop.f32.mrf.mxu0
      %v202 = vadd.f32 %v123, %v201
      %v203 = vpop.f32.mrf.mxu0
      %204 = vmatprep.mubr.f32.mxu0 0.0
      %205 = vmatmul.mubr.f32.gmra.mxu0 %v89
      %v206 = vpop.f32.mrf.mxu0
      %v207 = vadd.f32 %v123, %v206
      %v208 = vpop.f32.mrf.mxu0
      %209 = vmatprep.mubr.f32.mxu0 0.0
      %210 = vmatmul.mubr.f32.gmra.mxu0 %v90
      %v211 = vpop.f32.mrf.mxu0
      %v212 = vadd.f32 %v123, %v211
      %v213 = vpop.f32.mrf.mxu0
      %214 = vmatprep.mubr.f32.mxu0 0.0
      %215 = vmatmul.mubr.f32.gmra.mxu0 %v91
      %v216 = vpop.f32.mrf.mxu0
      %v217 = vadd.f32 %v123, %v216
      %v218 = vpop.f32.mrf.mxu0
      %219 = vmatprep.mubr.f32.mxu0 0.0
      %220 = vmatmul.mubr.f32.gmra.mxu0 %v92
      %v221 = vpop.f32.mrf.mxu0
      %v222 = vadd.f32 %v123, %v221
      %v223 = vpop.f32.mrf.mxu0
      %224 = vmatprep.mubr.f32.mxu0 0.0
      %225 = vmatmul.mubr.f32.gmra.mxu0 %v93
      %v226 = vpop.f32.mrf.mxu0
      %v227 = vadd.f32 %v123, %v226
      %v228 = vpop.f32.mrf.mxu0
      %229 = vmatprep.mubr.f32.mxu0 0.0
      %230 = vmatmul.mubr.f32.gmra.mxu0 %v94
      %v231 = vpop.f32.mrf.mxu0
      %v232 = vadd.f32 %v123, %v231
      %v233 = vpop.f32.mrf.mxu0
      %234 = vmatprep.mubr.f32.mxu0 0.0
      %235 = vmatmul.mubr.f32.gmra.mxu0 %v95
      %v236 = vpop.f32.mrf.mxu0
      %v237 = vadd.f32 %v123, %v236
      %v238 = vpop.f32.mrf.mxu0
      %239 = vmatprep.mubr.f32.mxu0 0.0
      %240 = vmatmul.mubr.f32.gmra.mxu0 %v96
      %v241 = vpop.f32.mrf.mxu0
      %v242 = vadd.f32 %v123, %v241
      %v243 = vpop.f32.mrf.mxu0
      %244 = vmatprep.mubr.f32.mxu0 0.0
      %245 = vmatmul.mubr.f32.gmra.mxu0 %v97
      %v246 = vpop.f32.mrf.mxu0
      %v247 = vadd.f32 %v123, %v246
      %v248 = vpop.f32.mrf.mxu0
      %249 = vmatprep.mubr.f32.mxu0 0.0
      %250 = vmatmul.mubr.f32.gmra.mxu0 %v98
      %v251 = vpop.f32.mrf.mxu0
      %v252 = vadd.f32 %v123, %v251
      %v253 = vpop.f32.mrf.mxu0
      %254 = vmatprep.mubr.f32.mxu0 0.0
      %255 = vmatmul.mubr.f32.gmra.mxu0 %v99
      %v256 = vpop.f32.mrf.mxu0
      %v257 = vadd.f32 %v123, %v256
      %v258 = vpop.f32.mrf.mxu0
      %259 = vmatprep.mubr.f32.mxu0 0.0
      %260 = vmatmul.mubr.f32.gmra.mxu0 %v100
      %v261 = vpop.f32.mrf.mxu0
      %v262 = vadd.f32 %v123, %v261
      %v263 = vpop.f32.mrf.mxu0
      %264 = vmatprep.mubr.f32.mxu0 0.0
      %265 = vmatmul.mubr.f32.gmra.mxu0 %v101
      %v266 = vpop.f32.mrf.mxu0
      %v267 = vadd.f32 %v123, %v266
      %v268 = vpop.f32.mrf.mxu0
      %269 = vdwg.mxu0
      %v270 = vmul.f32 %v192, 0.01
      %v271 = vmul.f32 %v197, 0.01
      %v272 = vmul.f32 %v202, 0.01
      %v273 = vmul.f32 %v207, 0.01
      %v274 = vmul.f32 %v212, 0.01
      %v275 = vmul.f32 %v217, 0.01
      %v276 = vmul.f32 %v222, 0.01
      %v277 = vmul.f32 %v227, 0.01
      %v278 = vmul.f32 %v232, 0.01
      %v279 = vmul.f32 %v237, 0.01
      %v280 = vmul.f32 %v242, 0.01
      %v281 = vmul.f32 %v247, 0.01
      %v282 = vmul.f32 %v252, 0.01
      %v283 = vmul.f32 %v257, 0.01
      %v284 = vmul.f32 %v262, 0.01
      %v285 = vmul.f32 %v267, 0.01
      %v286 = vmax.f32 %v192, %v270
      %v287 = vmax.f32 %v197, %v271
      %v288 = vmax.f32 %v202, %v272
      %v289 = vmax.f32 %v207, %v273
      %v290 = vmax.f32 %v212, %v274
      %v291 = vmax.f32 %v217, %v275
      %v292 = vmax.f32 %v222, %v276
      %v293 = vmax.f32 %v227, %v277
      %v294 = vmax.f32 %v232, %v278
      %v295 = vmax.f32 %v237, %v279
      %v296 = vmax.f32 %v242, %v280
      %v297 = vmax.f32 %v247, %v281
      %v298 = vmax.f32 %v252, %v282
      %v299 = vmax.f32 %v257, %v283
      %v300 = vmax.f32 %v262, %v284
      %v301 = vmax.f32 %v267, %v285
      %v302 = vld [vmem:[#allocation8] sm:$0xff]
      %v303 = vld [vmem:[#allocation8 + $0x8] sm:$0xff]
      %v304 = vld [vmem:[#allocation8 + $0x10] sm:$0xff]
      %v305 = vld [vmem:[#allocation8 + $0x18] sm:$0xff]
      %v306 = vld [vmem:[#allocation8 + $0x20] sm:$0xff]
      %v307 = vld [vmem:[#allocation8 + $0x28] sm:$0xff]
      %v308 = vld [vmem:[#allocation8 + $0x30] sm:$0xff]
      %v309 = vld [vmem:[#allocation8 + $0x38] sm:$0xff]
      %v310 = vld [vmem:[#allocation8 + $0x40] sm:$0xff]
      %v311 = vld [vmem:[#allocation8 + $0x48] sm:$0xff]
      %v312 = vld [vmem:[#allocation8 + $0x50] sm:$0xff]
      %v313 = vld [vmem:[#allocation8 + $0x58] sm:$0xff]
      %v314 = vld [vmem:[#allocation8 + $0x60] sm:$0xff]
      %v315 = vld [vmem:[#allocation8 + $0x68] sm:$0xff]
      %v316 = vld [vmem:[#allocation8 + $0x70] sm:$0xff]
      %v317 = vld [vmem:[#allocation8 + $0x78] sm:$0xff]
      %v318 = vld [vmem:[%s4] sm:$0x1]
      %v320 = vlaneseq
      %v321 = vshrl.u32 %v320, 7
      %v322 = vsub.s32 0, %v321
      %v323 = vrot.slane %v318, %v322
      %325 = vmatprep.subr.mxu0 0.0
      %326 = vmatpush1.msra.mxu0 %v317
      %327 = vmatprep.subr.mxu0 0.0
      %328 = vmatpush1.msra.mxu0 %v316
      %329 = vmatprep.subr.mxu0 0.0
      %330 = vmatpush1.msra.mxu0 %v315
      %331 = vmatprep.subr.mxu0 0.0
      %332 = vmatpush1.msra.mxu0 %v314
      %333 = vmatprep.subr.mxu0 0.0
      %334 = vmatpush1.msra.mxu0 %v313
      %335 = vmatprep.subr.mxu0 0.0
      %336 = vmatpush1.msra.mxu0 %v312
      %337 = vmatprep.subr.mxu0 0.0
      %338 = vmatpush1.msra.mxu0 %v311
      %339 = vmatprep.subr.mxu0 0.0
      %340 = vmatpush1.msra.mxu0 %v310
      %341 = vmatprep.subr.mxu0 0.0
      %342 = vmatpush1.msra.mxu0 %v309
      %343 = vmatprep.subr.mxu0 0.0
      %344 = vmatpush1.msra.mxu0 %v308
      %345 = vmatprep.subr.mxu0 0.0
      %346 = vmatpush1.msra.mxu0 %v307
      %347 = vmatprep.subr.mxu0 0.0
      %348 = vmatpush1.msra.mxu0 %v306
      %349 = vmatprep.subr.mxu0 0.0
      %350 = vmatpush1.msra.mxu0 %v305
      %351 = vmatprep.subr.mxu0 0.0
      %352 = vmatpush1.msra.mxu0 %v304
      %353 = vmatprep.subr.mxu0 0.0
      %354 = vmatpush1.msra.mxu0 %v303
      %355 = vmatprep.subr.mxu0 0.0
      %356 = vmatpush1.msra.mxu0 %v302
      %357 = vmatprep.subr.mxu0 0.0
      %358 = vmatpush2.msra.mxu0 0.0
      %359 = vmatprep.subr.mxu0 0.0
      %360 = vmatpush2.msra.mxu0 0.0
      %361 = vmatprep.subr.mxu0 0.0
      %362 = vmatpush2.msra.mxu0 0.0
      %363 = vmatprep.subr.mxu0 0.0
      %364 = vmatpush2.msra.mxu0 0.0
      %365 = vmatprep.subr.mxu0 0.0
      %366 = vmatpush2.msra.mxu0 0.0
      %367 = vmatprep.subr.mxu0 0.0
      %368 = vmatpush2.msra.mxu0 0.0
      %369 = vmatprep.subr.mxu0 0.0
      %370 = vmatpush2.msra.mxu0 0.0
      %371 = vmatprep.subr.mxu0 0.0
      %372 = vmatpush2.msra.mxu0 0.0
      %373 = vmatprep.subr.mxu0 0.0
      %374 = vmatpush2.msra.mxu0 0.0
      %375 = vmatprep.subr.mxu0 0.0
      %376 = vmatpush2.msra.mxu0 0.0
      %377 = vmatprep.subr.mxu0 0.0
      %378 = vmatpush2.msra.mxu0 0.0
      %379 = vmatprep.subr.mxu0 0.0
      %380 = vmatpush2.msra.mxu0 0.0
      %381 = vmatprep.subr.mxu0 0.0
      %382 = vmatpush2.msra.mxu0 0.0
      %383 = vmatprep.subr.mxu0 0.0
      %384 = vmatpush2.msra.mxu0 0.0
      %385 = vmatprep.subr.mxu0 0.0
      %386 = vmatpush2.msra.mxu0 0.0
      %387 = vmatprep.subr.mxu0 0.0
      %388 = vmatpush2.msra.mxu0 0.0
      %389 = vmatprep.mubr.f32.mxu0 0.0
      %390 = vmatmul.mubr.f32.gmra.mxu0 %v286
      %v391 = vpop.f32.mrf.mxu0
      %v392 = vadd.f32 %v323, %v391
      %v393 = vpop.f32.mrf.mxu0
      %394 = vmatprep.mubr.f32.mxu0 0.0
      %395 = vmatmul.mubr.f32.gmra.mxu0 %v287
      %v396 = vpop.f32.mrf.mxu0
      %v397 = vadd.f32 %v323, %v396
      %v398 = vpop.f32.mrf.mxu0
      %399 = vmatprep.mubr.f32.mxu0 0.0
      %400 = vmatmul.mubr.f32.gmra.mxu0 %v288
      %v401 = vpop.f32.mrf.mxu0
      %v402 = vadd.f32 %v323, %v401
      %v403 = vpop.f32.mrf.mxu0
      %404 = vmatprep.mubr.f32.mxu0 0.0
      %405 = vmatmul.mubr.f32.gmra.mxu0 %v289
      %v406 = vpop.f32.mrf.mxu0
      %v407 = vadd.f32 %v323, %v406
      %v408 = vpop.f32.mrf.mxu0
      %409 = vmatprep.mubr.f32.mxu0 0.0
      %410 = vmatmul.mubr.f32.gmra.mxu0 %v290
      %v411 = vpop.f32.mrf.mxu0
      %v412 = vadd.f32 %v323, %v411
      %v413 = vpop.f32.mrf.mxu0
      %414 = vmatprep.mubr.f32.mxu0 0.0
      %415 = vmatmul.mubr.f32.gmra.mxu0 %v291
      %v416 = vpop.f32.mrf.mxu0
      %v417 = vadd.f32 %v323, %v416
      %v418 = vpop.f32.mrf.mxu0
      %419 = vmatprep.mubr.f32.mxu0 0.0
      %420 = vmatmul.mubr.f32.gmra.mxu0 %v292
      %v421 = vpop.f32.mrf.mxu0
      %v422 = vadd.f32 %v323, %v421
      %v423 = vpop.f32.mrf.mxu0
      %424 = vmatprep.mubr.f32.mxu0 0.0
      %425 = vmatmul.mubr.f32.gmra.mxu0 %v293
      %v426 = vpop.f32.mrf.mxu0
      %v427 = vadd.f32 %v323, %v426
      %v428 = vpop.f32.mrf.mxu0
      %429 = vmatprep.mubr.f32.mxu0 0.0
      %430 = vmatmul.mubr.f32.gmra.mxu0 %v294
      %v431 = vpop.f32.mrf.mxu0
      %v432 = vadd.f32 %v323, %v431
      %v433 = vpop.f32.mrf.mxu0
      %434 = vmatprep.mubr.f32.mxu0 0.0
      %435 = vmatmul.mubr.f32.gmra.mxu0 %v295
      %v436 = vpop.f32.mrf.mxu0
      %v437 = vadd.f32 %v323, %v436
      %v438 = vpop.f32.mrf.mxu0
      %439 = vmatprep.mubr.f32.mxu0 0.0
      %440 = vmatmul.mubr.f32.gmra.mxu0 %v296
      %v441 = vpop.f32.mrf.mxu0
      %v442 = vadd.f32 %v323, %v441
      %v443 = vpop.f32.mrf.mxu0
      %444 = vmatprep.mubr.f32.mxu0 0.0
      %445 = vmatmul.mubr.f32.gmra.mxu0 %v297
      %v446 = vpop.f32.mrf.mxu0
      %v447 = vadd.f32 %v323, %v446
      %v448 = vpop.f32.mrf.mxu0
      %449 = vmatprep.mubr.f32.mxu0 0.0
      %450 = vmatmul.mubr.f32.gmra.mxu0 %v298
      %v451 = vpop.f32.mrf.mxu0
      %v452 = vadd.f32 %v323, %v451
      %v453 = vpop.f32.mrf.mxu0
      %454 = vmatprep.mubr.f32.mxu0 0.0
      %455 = vmatmul.mubr.f32.gmra.mxu0 %v299
      %v456 = vpop.f32.mrf.mxu0
      %v457 = vadd.f32 %v323, %v456
      %v458 = vpop.f32.mrf.mxu0
      %459 = vmatprep.mubr.f32.mxu0 0.0
      %460 = vmatmul.mubr.f32.gmra.mxu0 %v300
      %v461 = vpop.f32.mrf.mxu0
      %v462 = vadd.f32 %v323, %v461
      %v463 = vpop.f32.mrf.mxu0
      %464 = vmatprep.mubr.f32.mxu0 0.0
      %465 = vmatmul.mubr.f32.gmra.mxu0 %v301
      %v466 = vpop.f32.mrf.mxu0
      %v467 = vadd.f32 %v323, %v466
      %v468 = vpop.f32.mrf.mxu0
      %469 = vdwg.mxu0
      %v470 = vmul.f32 %v392, 0.01
      %v471 = vmul.f32 %v397, 0.01
      %v472 = vmul.f32 %v402, 0.01
      %v473 = vmul.f32 %v407, 0.01
      %v474 = vmul.f32 %v412, 0.01
      %v475 = vmul.f32 %v417, 0.01
      %v476 = vmul.f32 %v422, 0.01
      %v477 = vmul.f32 %v427, 0.01
      %v478 = vmul.f32 %v432, 0.01
      %v479 = vmul.f32 %v437, 0.01
      %v480 = vmul.f32 %v442, 0.01
      %v481 = vmul.f32 %v447, 0.01
      %v482 = vmul.f32 %v452, 0.01
      %v483 = vmul.f32 %v457, 0.01
      %v484 = vmul.f32 %v462, 0.01
      %v485 = vmul.f32 %v467, 0.01
      %v486 = vmax.f32 %v392, %v470
      %v487 = vmax.f32 %v397, %v471
      %v488 = vmax.f32 %v402, %v472
      %v489 = vmax.f32 %v407, %v473
      %v490 = vmax.f32 %v412, %v474
      %v491 = vmax.f32 %v417, %v475
      %v492 = vmax.f32 %v422, %v476
      %v493 = vmax.f32 %v427, %v477
      %v494 = vmax.f32 %v432, %v478
      %v495 = vmax.f32 %v437, %v479
      %v496 = vmax.f32 %v442, %v480
      %v497 = vmax.f32 %v447, %v481
      %v498 = vmax.f32 %v452, %v482
      %v499 = vmax.f32 %v457, %v483
      %v500 = vmax.f32 %v462, %v484
      %v501 = vmax.f32 %v467, %v485
      %502 = vst [vmem:[#allocation2] sm:$0xff] %v486
      %503 = vst [vmem:[#allocation2 + $0x8] sm:$0xff] %v487
      %504 = vst [vmem:[#allocation2 + $0x10] sm:$0xff] %v488
      %505 = vst [vmem:[#allocation2 + $0x18] sm:$0xff] %v489
      %506 = vst [vmem:[#allocation2 + $0x20] sm:$0xff] %v490
      %507 = vst [vmem:[#allocation2 + $0x28] sm:$0xff] %v491
      %508 = vst [vmem:[#allocation2 + $0x30] sm:$0xff] %v492
      %509 = vst [vmem:[#allocation2 + $0x38] sm:$0xff] %v493
      %510 = vst [vmem:[#allocation2 + $0x40] sm:$0xff] %v494
      %511 = vst [vmem:[#allocation2 + $0x48] sm:$0xff] %v495
      %512 = vst [vmem:[#allocation2 + $0x50] sm:$0xff] %v496
      %513 = vst [vmem:[#allocation2 + $0x58] sm:$0xff] %v497
      %514 = vst [vmem:[#allocation2 + $0x60] sm:$0xff] %v498
      %515 = vst [vmem:[#allocation2 + $0x68] sm:$0xff] %v499
      %516 = vst [vmem:[#allocation2 + $0x70] sm:$0xff] %v500
      %517 = vst [vmem:[#allocation2 + $0x78] sm:$0xff] %v501
    $region49: #{tpu_custom_call.1} parent=1 // pred_fallthru
      _
    %v518 = vld [vmem:[#allocation2] sm:$0xff]
    %v519 = vld [vmem:[#allocation2 + $0x8] sm:$0xff]
    %v520 = vld [vmem:[#allocation2 + $0x10] sm:$0xff]
    %v521 = vld [vmem:[#allocation2 + $0x18] sm:$0xff]
    %v522 = vld [vmem:[#allocation2 + $0x20] sm:$0xff]
    %v523 = vld [vmem:[#allocation2 + $0x28] sm:$0xff]
    %v524 = vld [vmem:[#allocation2 + $0x30] sm:$0xff]
    %v525 = vld [vmem:[#allocation2 + $0x38] sm:$0xff]
    %v526 = vld [vmem:[#allocation2 + $0x40] sm:$0xff]
    %v527 = vld [vmem:[#allocation2 + $0x48] sm:$0xff]
    %v528 = vld [vmem:[#allocation2 + $0x50] sm:$0xff]
    %v529 = vld [vmem:[#allocation2 + $0x58] sm:$0xff]
    %v530 = vld [vmem:[#allocation2 + $0x60] sm:$0xff]
    %v531 = vld [vmem:[#allocation2 + $0x68] sm:$0xff]
    %v532 = vld [vmem:[#allocation2 + $0x70] sm:$0xff]
    %v533 = vld [vmem:[#allocation2 + $0x78] sm:$0xff]
    %v534 = vld [vmem:[#allocation9] sm:$0xff]
    %v535 = vld [vmem:[#allocation9 + $0x8] sm:$0xff]
    %v536 = vld [vmem:[#allocation9 + $0x10] sm:$0xff]
    %v537 = vld [vmem:[#allocation9 + $0x18] sm:$0xff]
    %v538 = vld [vmem:[#allocation9 + $0x20] sm:$0xff]
    %v539 = vld [vmem:[#allocation9 + $0x28] sm:$0xff]
    %v540 = vld [vmem:[#allocation9 + $0x30] sm:$0xff]
    %v541 = vld [vmem:[#allocation9 + $0x38] sm:$0xff]
    %v542 = vld [vmem:[#allocation9 + $0x40] sm:$0xff]
    %v543 = vld [vmem:[#allocation9 + $0x48] sm:$0xff]
    %v544 = vld [vmem:[#allocation9 + $0x50] sm:$0xff]
    %v545 = vld [vmem:[#allocation9 + $0x58] sm:$0xff]
    %v546 = vld [vmem:[#allocation9 + $0x60] sm:$0xff]
    %v547 = vld [vmem:[#allocation9 + $0x68] sm:$0xff]
    %v548 = vld [vmem:[#allocation9 + $0x70] sm:$0xff]
    %v549 = vld [vmem:[#allocation9 + $0x78] sm:$0xff]
    %v550 = vld [vmem:[%s6] sm:$0x1]
    %v552 = vlaneseq
    %v553 = vshrl.u32 %v552, 7
    %v554 = vsub.s32 0, %v553
    %v555 = vrot.slane %v550, %v554
    %557 = vmatprep.subr.mxu0 0.0
    %558 = vmatpush1.msra.mxu0 %v549
    %559 = vmatprep.subr.mxu0 0.0
    %560 = vmatpush1.msra.mxu0 %v548
    %561 = vmatprep.subr.mxu0 0.0
    %562 = vmatpush1.msra.mxu0 %v547
    %563 = vmatprep.subr.mxu0 0.0
    %564 = vmatpush1.msra.mxu0 %v546
    %565 = vmatprep.subr.mxu0 0.0
    %566 = vmatpush1.msra.mxu0 %v545
    %567 = vmatprep.subr.mxu0 0.0
    %568 = vmatpush1.msra.mxu0 %v544
    %569 = vmatprep.subr.mxu0 0.0
    %570 = vmatpush1.msra.mxu0 %v543
    %571 = vmatprep.subr.mxu0 0.0
    %572 = vmatpush1.msra.mxu0 %v542
    %573 = vmatprep.subr.mxu0 0.0
    %574 = vmatpush1.msra.mxu0 %v541
    %575 = vmatprep.subr.mxu0 0.0
    %576 = vmatpush1.msra.mxu0 %v540
    %577 = vmatprep.subr.mxu0 0.0
    %578 = vmatpush1.msra.mxu0 %v539
    %579 = vmatprep.subr.mxu0 0.0
    %580 = vmatpush1.msra.mxu0 %v538
    %581 = vmatprep.subr.mxu0 0.0
    %582 = vmatpush1.msra.mxu0 %v537
    %583 = vmatprep.subr.mxu0 0.0
    %584 = vmatpush1.msra.mxu0 %v536
    %585 = vmatprep.subr.mxu0 0.0
    %586 = vmatpush1.msra.mxu0 %v535
    %587 = vmatprep.subr.mxu0 0.0
    %588 = vmatpush1.msra.mxu0 %v534
    %589 = vmatprep.subr.mxu0 0.0
    %590 = vmatpush2.msra.mxu0 0.0
    %591 = vmatprep.subr.mxu0 0.0
    %592 = vmatpush2.msra.mxu0 0.0
    %593 = vmatprep.subr.mxu0 0.0
    %594 = vmatpush2.msra.mxu0 0.0
    %595 = vmatprep.subr.mxu0 0.0
    %596 = vmatpush2.msra.mxu0 0.0
    %597 = vmatprep.subr.mxu0 0.0
    %598 = vmatpush2.msra.mxu0 0.0
    %599 = vmatprep.subr.mxu0 0.0
    %600 = vmatpush2.msra.mxu0 0.0
    %601 = vmatprep.subr.mxu0 0.0
    %602 = vmatpush2.msra.mxu0 0.0
    %603 = vmatprep.subr.mxu0 0.0
    %604 = vmatpush2.msra.mxu0 0.0
    %605 = vmatprep.subr.mxu0 0.0
    %606 = vmatpush2.msra.mxu0 0.0
    %607 = vmatprep.subr.mxu0 0.0
    %608 = vmatpush2.msra.mxu0 0.0
    %609 = vmatprep.subr.mxu0 0.0
    %610 = vmatpush2.msra.mxu0 0.0
    %611 = vmatprep.subr.mxu0 0.0
    %612 = vmatpush2.msra.mxu0 0.0
    %613 = vmatprep.subr.mxu0 0.0
    %614 = vmatpush2.msra.mxu0 0.0
    %615 = vmatprep.subr.mxu0 0.0
    %616 = vmatpush2.msra.mxu0 0.0
    %617 = vmatprep.subr.mxu0 0.0
    %618 = vmatpush2.msra.mxu0 0.0
    %619 = vmatprep.subr.mxu0 0.0
    %620 = vmatpush2.msra.mxu0 0.0
    %621 = vmatprep.mubr.f32.mxu0 0.0
    %622 = vmatmul.mubr.f32.gmra.mxu0 %v518
    %v623 = vpop.f32.mrf.mxu0
    %v624 = vadd.f32 %v555, %v623
    %v625 = vpop.f32.mrf.mxu0
    %626 = vmatprep.mubr.f32.mxu0 0.0
    %627 = vmatmul.mubr.f32.gmra.mxu0 %v519
    %v628 = vpop.f32.mrf.mxu0
    %v629 = vadd.f32 %v555, %v628
    %v630 = vpop.f32.mrf.mxu0
    %631 = vmatprep.mubr.f32.mxu0 0.0
    %632 = vmatmul.mubr.f32.gmra.mxu0 %v520
    %v633 = vpop.f32.mrf.mxu0
    %v634 = vadd.f32 %v555, %v633
    %v635 = vpop.f32.mrf.mxu0
    %636 = vmatprep.mubr.f32.mxu0 0.0
    %637 = vmatmul.mubr.f32.gmra.mxu0 %v521
    %v638 = vpop.f32.mrf.mxu0
    %v639 = vadd.f32 %v555, %v638
    %v640 = vpop.f32.mrf.mxu0
    %641 = vmatprep.mubr.f32.mxu0 0.0
    %642 = vmatmul.mubr.f32.gmra.mxu0 %v522
    %v643 = vpop.f32.mrf.mxu0
    %v644 = vadd.f32 %v555, %v643
    %v645 = vpop.f32.mrf.mxu0
    %646 = vmatprep.mubr.f32.mxu0 0.0
    %647 = vmatmul.mubr.f32.gmra.mxu0 %v523
    %v648 = vpop.f32.mrf.mxu0
    %v649 = vadd.f32 %v555, %v648
    %v650 = vpop.f32.mrf.mxu0
    %651 = vmatprep.mubr.f32.mxu0 0.0
    %652 = vmatmul.mubr.f32.gmra.mxu0 %v524
    %v653 = vpop.f32.mrf.mxu0
    %v654 = vadd.f32 %v555, %v653
    %v655 = vpop.f32.mrf.mxu0
    %656 = vmatprep.mubr.f32.mxu0 0.0
    %657 = vmatmul.mubr.f32.gmra.mxu0 %v525
    %v658 = vpop.f32.mrf.mxu0
    %v659 = vadd.f32 %v555, %v658
    %v660 = vpop.f32.mrf.mxu0
    %661 = vmatprep.mubr.f32.mxu0 0.0
    %662 = vmatmul.mubr.f32.gmra.mxu0 %v526
    %v663 = vpop.f32.mrf.mxu0
    %v664 = vadd.f32 %v555, %v663
    %v665 = vpop.f32.mrf.mxu0
    %666 = vmatprep.mubr.f32.mxu0 0.0
    %667 = vmatmul.mubr.f32.gmra.mxu0 %v527
    %v668 = vpop.f32.mrf.mxu0
    %v669 = vadd.f32 %v555, %v668
    %v670 = vpop.f32.mrf.mxu0
    %671 = vmatprep.mubr.f32.mxu0 0.0
    %672 = vmatmul.mubr.f32.gmra.mxu0 %v528
    %v673 = vpop.f32.mrf.mxu0
    %v674 = vadd.f32 %v555, %v673
    %v675 = vpop.f32.mrf.mxu0
    %676 = vmatprep.mubr.f32.mxu0 0.0
    %677 = vmatmul.mubr.f32.gmra.mxu0 %v529
    %v678 = vpop.f32.mrf.mxu0
    %v679 = vadd.f32 %v555, %v678
    %v680 = vpop.f32.mrf.mxu0
    %681 = vmatprep.mubr.f32.mxu0 0.0
    %682 = vmatmul.mubr.f32.gmra.mxu0 %v530
    %v683 = vpop.f32.mrf.mxu0
    %v684 = vadd.f32 %v555, %v683
    %v685 = vpop.f32.mrf.mxu0
    %686 = vmatprep.mubr.f32.mxu0 0.0
    %687 = vmatmul.mubr.f32.gmra.mxu0 %v531
    %v688 = vpop.f32.mrf.mxu0
    %v689 = vadd.f32 %v555, %v688
    %v690 = vpop.f32.mrf.mxu0
    %691 = vmatprep.mubr.f32.mxu0 0.0
    %692 = vmatmul.mubr.f32.gmra.mxu0 %v532
    %v693 = vpop.f32.mrf.mxu0
    %v694 = vadd.f32 %v555, %v693
    %v695 = vpop.f32.mrf.mxu0
    %696 = vmatprep.mubr.f32.mxu0 0.0
    %697 = vmatmul.mubr.f32.gmra.mxu0 %v533
    %v698 = vpop.f32.mrf.mxu0
    %v699 = vadd.f32 %v555, %v698
    %v700 = vpop.f32.mrf.mxu0
    %701 = vdwg.mxu0
    %702 = vst [vmem:[#allocation11] sm:$0xff] %v624
    %703 = vst [vmem:[#allocation11 + $0x8] sm:$0xff] %v629
    %704 = vst [vmem:[#allocation11 + $0x10] sm:$0xff] %v634
    %705 = vst [vmem:[#allocation11 + $0x18] sm:$0xff] %v639
    %706 = vst [vmem:[#allocation11 + $0x20] sm:$0xff] %v644
    %707 = vst [vmem:[#allocation11 + $0x28] sm:$0xff] %v649
    %708 = vst [vmem:[#allocation11 + $0x30] sm:$0xff] %v654
    %709 = vst [vmem:[#allocation11 + $0x38] sm:$0xff] %v659
    %710 = vst [vmem:[#allocation11 + $0x40] sm:$0xff] %v664
    %711 = vst [vmem:[#allocation11 + $0x48] sm:$0xff] %v669
    %712 = vst [vmem:[#allocation11 + $0x50] sm:$0xff] %v674
    %713 = vst [vmem:[#allocation11 + $0x58] sm:$0xff] %v679
    %714 = vst [vmem:[#allocation11 + $0x60] sm:$0xff] %v684
    %715 = vst [vmem:[#allocation11 + $0x68] sm:$0xff] %v689
    %716 = vst [vmem:[#allocation11 + $0x70] sm:$0xff] %v694
    %717 = vst [vmem:[#allocation11 + $0x78] sm:$0xff] %v699
    // Predicated region
    $region50: #{tpu_custom_call.1} parent=1 // pred_check
      _
    $region51: #{tpu_custom_call.1} parent=1 // pred_check_branch
      %719 = sbr.rel (0) target = $region53
    $region52: #{tpu_custom_call.1} parent=1 // pred_region
      %s721 = ssub.s32 2048, 2048
      %722 = vsyncadd [#allocation5], %s721
      %s723 = sshll.u32 [#allocation11], 4
      %s724 = int_to_ptr.vmem [resolvable:$true] %s723
      %729 = dma.vmem_to_hbm [thread:$0]  %s724, 2048, %s7, [#allocation5], 128, 128, 8
    $region53: #{tpu_custom_call.1} parent=1 // pred_fallthru
      _
    // Predicated region
    $region54: #{tpu_custom_call.1} parent=1 // pred_check
      _
    $region55: #{tpu_custom_call.1} parent=1 // pred_check_branch
      %731 = sbr.rel (0) target = $region57
    $region56: #{tpu_custom_call.1} parent=1 // pred_region
      %732 = dma.done [#allocation5], 2048
    $region57: #{tpu_custom_call.1} parent=1 // pred_fallthru
      _
    %733 = vsyncpa [#allocation4], 1
    %734 = vsyncpa [#allocation7], 1
    %735 = vsyncpa [#allocation10], 1
    %736 = vsyncpa [#allocation5], 1

</llo_original>
